<compile_context>
chip_gen: v6e
topology: v6e:2x2x1
jax: 0.10.0
libtpu: 0.0.40
codegen_flags: <defaults>
</compile_context>

<pallas_src>
import jax
import jax.numpy as jnp
from jax.experimental import pallas as pl
from jax.experimental.pallas import tpu as pltpu

LANES = 128            # lane width
SUB = 8                # sublanes per f32 vreg
ALIGN = SUB * LANES    # kernel consumes a 1024-aligned prefix; tail done in JAX


def _cdiv(a, b):
    return -(-a // b)


def _device_kind():
    try:
        return jax.devices()[0].device_kind.lower()
    except Exception:
        return ""


_IS_V7 = "v7" in _device_kind()
if _IS_V7:
    ROW_BLOCK = 16384                    # 8 MiB / input tile (f32)
    NUM_SPLITS = 2                       # one partial block per TensorCore
    VMEM_LIMIT = 40 * 1024 * 1024        # 2 in x 2 buf x 8 MiB + out + headroom
else:
    ROW_BLOCK = 8192                     # 4 MiB / input tile (f32)
    NUM_SPLITS = 1                       # single TensorCore on v5e / v6e
    VMEM_LIMIT = 32 * 1024 * 1024


def _wbce_kernel(nrows_ref, w_ref, x_ref, t_ref, out_ref):
    # nrows_ref: SMEM (1,) int32   -- valid rows of the (rows, 128) view
    # w_ref:     SMEM (2,) float32 -- [weight for target==1, weight for target==0]
    # x_ref/t_ref: (row_block, LANES) VMEM tiles (any dtype; upcast here)
    # out_ref:   (1, SUB, LANES) f32 partial-sum block, resident across the
    #            inner ("arbitrary") axis; one block per core split.
    c = pl.program_id(0)
    i = pl.program_id(1)

    @pl.when(i == 0)
    def _():
        out_ref[...] = jnp.zeros_like(out_ref)

    x = x_ref[...].astype(jnp.float32)
    t = t_ref[...].astype(jnp.float32)

    # Exact module semantics: weight[0] where t==1, weight[1] where t==0, else 0
    # (soft / label-smoothed targets intentionally get zero weight).
    w = jnp.where(t == 1.0, w_ref[0], jnp.where(t == 0.0, w_ref[1], 0.0))

    # Numerically stable BCE-with-logits (same form PyTorch uses):
    #   l = max(x, 0) - x*t + log(1 + exp(-|x|))
    per_elem = jnp.maximum(x, 0.0) - x * t + jnp.log1p(jnp.exp(-jnp.abs(x)))
    contrib = w * per_elem

    block_rows = contrib.shape[0]
    row0 = (c * pl.num_programs(1) + i) * block_rows
    is_full = row0 + block_rows <= nrows_ref[0]

    # Steady state: unmasked VPU-only fold onto the resident (8, 128) slab.
    @pl.when(is_full)
    def _():
        out_ref[...] += jnp.sum(contrib.reshape(-1, SUB, LANES), axis=0)[None]

    # Cold path (at most one step per split): ragged last block / clamped
    # duplicate block.  Masked with a select so NaN/Inf garbage cannot leak.
    @pl.when(jnp.logical_not(is_full))
    def _():
        row_ids = row0 + jax.lax.broadcasted_iota(jnp.int32, contrib.shape, 0)
        masked = jnp.where(row_ids < nrows_ref[0], contrib, 0.0)
        out_ref[...] += jnp.sum(masked.reshape(-1, SUB, LANES), axis=0)[None]


def _elementwise_loss(x, t, w_pos, w_neg):
    x = x.astype(jnp.float32)
    t = t.astype(jnp.float32)
    w = jnp.where(t == 1.0, w_pos, jnp.where(t == 0.0, w_neg, 0.0))
    return w * (jnp.maximum(x, 0.0) - x * t + jnp.log1p(jnp.exp(-jnp.abs(x))))


@jax.jit
def weighted_bce_with_logits_loss(inputs, targets, weight):
    """weight: shape (2,) -> [weight for target==1, weight for target==0]."""
    n = inputs.size
    w = jnp.asarray(weight).astype(jnp.float32)

    x = inputs.reshape(-1)
    t = targets.reshape(-1)

    n_main = (n // ALIGN) * ALIGN   # 1024-aligned prefix goes through the kernel
    total = jnp.float32(0.0)

    if n_main > 0:
        rows = n_main // LANES      # multiple of 8 by construction
        if n_main == n:
            x2 = x.reshape(rows, LANES)
            t2 = t.reshape(rows, LANES)
        else:
            x2 = x[:n_main].reshape(rows, LANES)
            t2 = t[:n_main].reshape(rows, LANES)

        row_block = min(ROW_BLOCK, rows)      # full dim when the array is small
        n_blocks = _cdiv(rows, row_block)
        splits = NUM_SPLITS if n_blocks >= NUM_SPLITS else 1
        inner = _cdiv(n_blocks, splits)

        def data_map(c, i, nrows_ref, w_ref):
            # Clamp so no fully out-of-bounds block is ever requested; the (at
            # most one) duplicated step is zeroed in-kernel by the row mask.
            return (jnp.minimum(c * inner + i, n_blocks - 1), 0)

        cost = pl.CostEstimate(
            flops=10 * n_main,
            transcendentals=2 * n_main,
            bytes_accessed=(
                x2.size * x2.dtype.itemsize
                + t2.size * t2.dtype.itemsize
                + splits * SUB * LANES * 4
            ),
        )

        partials = pl.pallas_call(
            _wbce_kernel,
            out_shape=jax.ShapeDtypeStruct((splits, SUB, LANES), jnp.float32),
            grid_spec=pltpu.PrefetchScalarGridSpec(
                num_scalar_prefetch=2,
                grid=(splits, inner),
                in_specs=[
                    pl.BlockSpec((row_block, LANES), data_map),
                    pl.BlockSpec((row_block, LANES), data_map),
                ],
                out_specs=pl.BlockSpec(
                    (1, SUB, LANES), lambda c, i, nrows_ref, w_ref: (c, 0, 0)
                ),
            ),
            compiler_params=pltpu.CompilerParams(
                dimension_semantics=("parallel", "arbitrary"),
                vmem_limit_bytes=VMEM_LIMIT,
            ),
            cost_estimate=cost,
        )(
            jnp.array([rows], dtype=jnp.int32),   # scalar-prefetch: valid rows
            w,                                    # scalar-prefetch: [w_pos, w_neg]
            x2,
            t2,
        )
        total = total + jnp.sum(partials)

    if n_main < n:
        # <=1023-element ragged tail: trivially cheap in plain JAX, no HBM copy
        # of the big prefix is forced and no pad trick is needed.
        x_tail = x[n_main:]
        t_tail = t[n_main:]
        total = total + jnp.sum(_elementwise_loss(x_tail, t_tail, w[0], w[1]))

    # PyTorch reduction='mean' divides by the total element count.
    return total / jnp.float32(n)


def _reference(inputs, targets, weight):
    x = inputs.astype(jnp.float32)
    t = targets.astype(jnp.float32)
    w = jnp.where(t == 1.0, weight[0], jnp.where(t == 0.0, weight[1], 0.0))
    per_elem = jnp.maximum(x, 0.0) - x * t + jnp.log1p(jnp.exp(-jnp.abs(x)))
    return jnp.mean(w * per_elem)


if __name__ == "__main__":
    key = jax.random.PRNGKey(0)
    k1, k2 = jax.random.split(key)

    N, C, H, W = 2, 4, 16, 16  # NCHW, matches the PyTorch convention
    logits = jax.random.normal(k1, (N, C, H, W), dtype=jnp.float32)
    targets = (jax.random.uniform(k2, (N, C, H, W)) > 0.5).astype(jnp.float32)

    # Deterministic "module parameter": class weights [w_pos, w_neg].
    class_weight = jnp.array([2.0, 0.5], dtype=jnp.float32)

    loss = weighted_bce_with_logits_loss(logits, targets, class_weight)
    loss = jax.block_until_ready(loss)

    ref = _reference(logits, targets, class_weight)
    assert jnp.allclose(loss, ref, rtol=1e-5, atol=1e-6), (loss, ref)

    print("KERNEL_OK")
</pallas_src>

<mosaic_0001>
module attributes {stable_mosaic.version = 11 : i64} {
  func.func @_wbce_kernel(%arg0: i32, %arg1: i32, %arg2: memref<1xi32, #tpu.memory_space<smem>>, %arg3: memref<2xf32, #tpu.memory_space<smem>>, %arg4: memref<16x128xf32, #tpu.memory_space<vmem>>, %arg5: memref<16x128xf32, #tpu.memory_space<vmem>>, %arg6: memref<1x8x128xf32, #tpu.memory_space<vmem>>) attributes {dimension_semantics = [#tpu.dimension_semantics<parallel>, #tpu.dimension_semantics<arbitrary>], iteration_bounds = array<i64: 1, 1>, scalar_prefetch = 2 : i64, scratch_operands = 0 : i64, tpu.core_type = #tpu.core_type<tc>, window_params = [{transform_indices = @transform_0, window_bounds = array<i64: 16, 128>}, {transform_indices = @transform_1, window_bounds = array<i64: 16, 128>}, {transform_indices = @transform_2, window_bounds = array<i64: 1, 8, 128>}]} {
    %c0_i32 = arith.constant 0 : i32
    %0 = arith.cmpi eq, %arg1, %c0_i32 : i32
    %1 = arith.extui %0 : i1 to i32
    %c0_i32_0 = arith.constant 0 : i32
    %2 = arith.cmpi ne, %1, %c0_i32_0 : i32
    scf.if %2 {
      %cst_13 = arith.constant 0.000000e+00 : f32
      %38 = vector.broadcast %cst_13 : f32 to vector<1x8x128xf32>
      %c0_14 = arith.constant 0 : index
      %c0_15 = arith.constant 0 : index
      %c0_16 = arith.constant 0 : index
      %39 = vector.load %arg6[%c0_14, %c0_15, %c0_16] : memref<1x8x128xf32, #tpu.memory_space<vmem>>, vector<1x8x128xf32>
      tpu.vector_store %arg6[%c0_14, %c0_15, %c0_16], %38 {strides = array<i32>} : memref<1x8x128xf32, #tpu.memory_space<vmem>>, vector<1x8x128xf32>,
    } else {
    }
    %c0 = arith.constant 0 : index
    %c0_1 = arith.constant 0 : index
    %3 = vector.load %arg4[%c0, %c0_1] : memref<16x128xf32, #tpu.memory_space<vmem>>, vector<16x128xf32>
    %c0_2 = arith.constant 0 : index
    %c0_3 = arith.constant 0 : index
    %4 = vector.load %arg5[%c0_2, %c0_3] : memref<16x128xf32, #tpu.memory_space<vmem>>, vector<16x128xf32>
    %cst = arith.constant 1.000000e+00 : f32
    %5 = vector.broadcast %cst : f32 to vector<16x128xf32>
    %6 = arith.cmpf oeq, %4, %5 : vector<16x128xf32>
    %c0_4 = arith.constant 0 : index
    %7 = memref.load %arg3[%c0_4] : memref<2xf32, #tpu.memory_space<smem>>
    %cst_5 = arith.constant 0.000000e+00 : f32
    %8 = vector.broadcast %cst_5 : f32 to vector<16x128xf32>
    %9 = arith.cmpf oeq, %4, %8 : vector<16x128xf32>
    %c1 = arith.constant 1 : index
    %10 = memref.load %arg3[%c1] : memref<2xf32, #tpu.memory_space<smem>>
    %cst_6 = arith.constant 0.000000e+00 : f32
    %11 = vector.broadcast %10 : f32 to vector<16x128xf32>
    %12 = vector.broadcast %cst_6 : f32 to vector<16x128xf32>
    %13 = arith.select %9, %11, %12 : vector<16x128xi1>, vector<16x128xf32>
    %14 = vector.broadcast %7 : f32 to vector<16x128xf32>
    %15 = arith.select %6, %14, %13 : vector<16x128xi1>, vector<16x128xf32>
    %cst_7 = arith.constant 0.000000e+00 : f32
    %16 = vector.broadcast %cst_7 : f32 to vector<16x128xf32>
    %17 = arith.maximumf %3, %16 : vector<16x128xf32>
    %18 = arith.mulf %3, %4 : vector<16x128xf32>
    %19 = arith.subf %17, %18 : vector<16x128xf32>
    %20 = math.absf %3 : vector<16x128xf32>
    %cst_8 = arith.constant 0.000000e+00 : f32
    %21 = vector.broadcast %cst_8 : f32 to vector<16x128xf32>
    %22 = arith.subf %21, %20 : vector<16x128xf32>
    %23 = math.exp %22 : vector<16x128xf32>
    %24 = math.log1p %23 : vector<16x128xf32>
    %25 = arith.addf %19, %24 : vector<16x128xf32>
    %26 = arith.mulf %15, %25 : vector<16x128xf32>
    %c1_i32 = arith.constant 1 : i32
    %27 = arith.muli %arg0, %c1_i32 : i32
    %28 = arith.addi %27, %arg1 : i32
    %c16_i32 = arith.constant 16 : i32
    %29 = arith.muli %28, %c16_i32 : i32
    %c16_i32_9 = arith.constant 16 : i32
    %30 = arith.addi %29, %c16_i32_9 : i32
    %c0_10 = arith.constant 0 : index
    %31 = memref.load %arg2[%c0_10] : memref<1xi32, #tpu.memory_space<smem>>
    %32 = arith.cmpi sle, %30, %31 : i32
    %33 = arith.extui %32 : i1 to i32
    %c0_i32_11 = arith.constant 0 : i32
    %34 = arith.cmpi ne, %33, %c0_i32_11 : i32
    scf.if %34 {
      %c0_13 = arith.constant 0 : index
      %c0_14 = arith.constant 0 : index
      %c0_15 = arith.constant 0 : index
      %38 = vector.load %arg6[%c0_13, %c0_14, %c0_15] : memref<1x8x128xf32, #tpu.memory_space<vmem>>, vector<1x8x128xf32>
      %39 = vector.shape_cast %26 : vector<16x128xf32> to vector<2x8x128xf32>
      %cst_16 = arith.constant dense<0.000000e+00> : vector<8x128xf32>
      %40 = vector.multi_reduction <add>, %39, %cst_16 [0] : vector<2x8x128xf32> to vector<8x128xf32>
      %41 = vector.shape_cast %40 : vector<8x128xf32> to vector<1x8x128xf32>
      %42 = arith.addf %38, %41 : vector<1x8x128xf32>
      %c0_17 = arith.constant 0 : index
      %c0_18 = arith.constant 0 : index
      %c0_19 = arith.constant 0 : index
      %43 = vector.load %arg6[%c0_17, %c0_18, %c0_19] : memref<1x8x128xf32, #tpu.memory_space<vmem>>, vector<1x8x128xf32>
      tpu.vector_store %arg6[%c0_17, %c0_18, %c0_19], %42 {strides = array<i32>} : memref<1x8x128xf32, #tpu.memory_space<vmem>>, vector<1x8x128xf32>,
    } else {
    }
    %true = arith.constant true
    %35 = arith.xori %32, %true : i1
    %36 = arith.extui %35 : i1 to i32
    %c0_i32_12 = arith.constant 0 : i32
    %37 = arith.cmpi ne, %36, %c0_i32_12 : i32
    scf.if %37 {
      %38 = tpu.iota {dimensions = array<i32: 0>} : vector<16x128xi32>
      %39 = vector.broadcast %29 : i32 to vector<16x128xi32>
      %40 = arith.addi %39, %38 : vector<16x128xi32>
      %c0_13 = arith.constant 0 : index
      %41 = memref.load %arg2[%c0_13] : memref<1xi32, #tpu.memory_space<smem>>
      %42 = vector.broadcast %41 : i32 to vector<16x128xi32>
      %43 = arith.cmpi slt, %40, %42 : vector<16x128xi32>
      %cst_14 = arith.constant 0.000000e+00 : f32
      %44 = vector.broadcast %cst_14 : f32 to vector<16x128xf32>
      %45 = arith.select %43, %26, %44 : vector<16x128xi1>, vector<16x128xf32>
      %c0_15 = arith.constant 0 : index
      %c0_16 = arith.constant 0 : index
      %c0_17 = arith.constant 0 : index
      %46 = vector.load %arg6[%c0_15, %c0_16, %c0_17] : memref<1x8x128xf32, #tpu.memory_space<vmem>>, vector<1x8x128xf32>
      %47 = vector.shape_cast %45 : vector<16x128xf32> to vector<2x8x128xf32>
      %cst_18 = arith.constant dense<0.000000e+00> : vector<8x128xf32>
      %48 = vector.multi_reduction <add>, %47, %cst_18 [0] : vector<2x8x128xf32> to vector<8x128xf32>
      %49 = vector.shape_cast %48 : vector<8x128xf32> to vector<1x8x128xf32>
      %50 = arith.addf %46, %49 : vector<1x8x128xf32>
      %c0_19 = arith.constant 0 : index
      %c0_20 = arith.constant 0 : index
      %c0_21 = arith.constant 0 : index
      %51 = vector.load %arg6[%c0_19, %c0_20, %c0_21] : memref<1x8x128xf32, #tpu.memory_space<vmem>>, vector<1x8x128xf32>
      tpu.vector_store %arg6[%c0_19, %c0_20, %c0_21], %50 {strides = array<i32>} : memref<1x8x128xf32, #tpu.memory_space<vmem>>, vector<1x8x128xf32>,
    } else {
    }
    return
  }
  func.func @transform_0(%arg0: i32, %arg1: i32, %arg2: memref<1xi32, #tpu.memory_space<smem>>, %arg3: memref<2xf32, #tpu.memory_space<smem>>) -> (i32, i32) {
    %c1_i32 = arith.constant 1 : i32
    %0 = arith.muli %arg0, %c1_i32 : i32
    %1 = arith.addi %0, %arg1 : i32
    %c0_i32 = arith.constant 0 : i32
    %2 = arith.minsi %1, %c0_i32 : i32
    %c0_i32_0 = arith.constant 0 : i32
    %c0_i32_1 = arith.constant 0 : i32
    return %2, %c0_i32_0 : i32, i32
  }
  func.func @transform_1(%arg0: i32, %arg1: i32, %arg2: memref<1xi32, #tpu.memory_space<smem>>, %arg3: memref<2xf32, #tpu.memory_space<smem>>) -> (i32, i32) {
    %c1_i32 = arith.constant 1 : i32
    %0 = arith.muli %arg0, %c1_i32 : i32
    %1 = arith.addi %0, %arg1 : i32
    %c0_i32 = arith.constant 0 : i32
    %2 = arith.minsi %1, %c0_i32 : i32
    %c0_i32_0 = arith.constant 0 : i32
    %c0_i32_1 = arith.constant 0 : i32
    return %2, %c0_i32_0 : i32, i32
  }
  func.func @transform_2(%arg0: i32, %arg1: i32, %arg2: memref<1xi32, #tpu.memory_space<smem>>, %arg3: memref<2xf32, #tpu.memory_space<smem>>) -> (i32, i32, i32) {
    %c0_i32 = arith.constant 0 : i32
    %c0_i32_0 = arith.constant 0 : i32
    %c0_i32_1 = arith.constant 0 : i32
    return %arg0, %c0_i32, %c0_i32_0 : i32, i32, i32
  }
}

</mosaic_0001>

<llo_original>
// kernel: weighted_bce_with_logits_loss.1
$region0: #{weighted_bce_with_logits_loss.1}
  #allocation0 [shape = 'u32[]', space=smem, size = 0x4, offset = 0x4, fixed_abs, tag = 'smem constant byte address 0x4 - core index']
  #allocation1 [shape = 'u32[144,128]{1,0:T(1,128)}', space=vmem, size = 0x12000, scoped, tag = 'internal scratch']
  #allocation2 [shape = 's32[1]{0}', space=sflag, size = 0x4, scoped, tag = 'scoped memory for weighted_bce_with_logits_loss.1']
  #allocation3 [shape = 's32[1]{0:T(128)S(6)}', space=smem, size = 0x200, scoped, tag = 'prefetched SMEM operand 0']
  #allocation4 [shape = 'u8[512]{0}', space=smem, size = 0x200, scoped, tag = 'prefetched SMEM operand 1']
  %s0 = inlined_call_operand.<no memory space> [shape: s32[1], index: 0, kind: input, shape index: {}]
  %s1 = inlined_call_operand.vmem [shape: f32[2], index: 1, kind: input, shape index: {}]
  %s2 = inlined_call_operand.vmem [shape: f32[16,128], index: 2, kind: input, shape index: {}]
  %s3 = inlined_call_operand.vmem [shape: f32[16,128], index: 3, kind: input, shape index: {}]
  %s4 = inlined_call_operand.vmem [shape: f32[1,8,128], index: 4, kind: output, shape index: {}]
  %s5 = sld [smem:[#allocation0]]
  $region30: #{weighted_bce_with_logits_loss.1} parent=0
    _
  %s7 = ssub.s32 1, %s5
  %s8 = scalar_select 0, %s7, %s5
  %9 = sst [smem:[#allocation3]] %s0
  %s10 = sshll.u32 %s1, 4
  %s11 = int_to_ptr.vmem [resolvable:$true] %s10
  %13 = dma.vmem_to_smem %s11, 16, [#allocation4], [#allocation2]
  %14 = dma.done [#allocation2], 16
  %15 = sfence
  // Predicated region
  $region2: #{weighted_bce_with_logits_loss.1} parent=0 // pred_check
    _
  $region3: #{weighted_bce_with_logits_loss.1} parent=0 // pred_check_branch
    %17 = sbr.rel (0) target = $region5
  $region4: #{weighted_bce_with_logits_loss.1} parent=0 // pred_region
    %s18 = sadd.s32 0, 0
    %p19 = scmp.lt.s32.totalorder %s18, 0
    %s20 = scalar_select %p19, %s18, 0
    %s21 = smul.u32 2, %s20
    %p22 = scmp.lt.s32.totalorder %s21, 1
    %s23 = scalar_select %p22, %s21, 1
    %s24 = smul.addr %s23, 8
    %s25 = scalar_lea.vmem %s2, %s24
    %s26 = sadd.s32 0, 0
    %p27 = scmp.lt.s32.totalorder %s26, 0
    %s28 = scalar_select %p27, %s26, 0
    %s29 = smul.u32 2, %s28
  $region5: #{weighted_bce_with_logits_loss.1} parent=0 // pred_fallthru
    _
  // Predicated region
  $region6: #{weighted_bce_with_logits_loss.1} parent=0 // pred_check
    _
  $region7: #{weighted_bce_with_logits_loss.1} parent=0 // pred_check_branch
    %31 = sbr.rel (0) target = $region9
  $region8: #{weighted_bce_with_logits_loss.1} parent=0 // pred_region
    %s32 = sadd.s32 0, 0
    %p33 = scmp.lt.s32.totalorder %s32, 0
    %s34 = scalar_select %p33, %s32, 0
    %s35 = smul.u32 2, %s34
    %p36 = scmp.lt.s32.totalorder %s35, 1
    %s37 = scalar_select %p36, %s35, 1
    %s38 = smul.addr %s37, 8
    %s39 = scalar_lea.vmem %s3, %s38
    %s40 = sadd.s32 0, 0
    %p41 = scmp.lt.s32.totalorder %s40, 0
    %s42 = scalar_select %p41, %s40, 0
    %s43 = smul.u32 2, %s42
  $region9: #{weighted_bce_with_logits_loss.1} parent=0 // pred_fallthru
    _
  %s44 = sadd.s32 0, 0
  %p45 = scmp.lt.s32.totalorder %s44, 0
  %s46 = scalar_select %p45, %s44, 0
  %s47 = smul.u32 2, %s46
  %p48 = scmp.lt.s32.totalorder %s47, 1
  %s49 = scalar_select %p48, %s47, 1
  %s50 = smul.addr %s49, 8
  %s51 = scalar_lea.vmem %s2, %s50
  %s52 = sadd.s32 0, 0
  %p53 = scmp.lt.s32.totalorder %s52, 0
  %s54 = scalar_select %p53, %s52, 0
  %s55 = smul.u32 2, %s54
  %p56 = scmp.lt.s32.totalorder %s55, 1
  %s57 = scalar_select %p56, %s55, 1
  %s58 = smul.addr %s57, 8
  %s59 = scalar_lea.vmem %s3, %s58
  %s60 = sadd.s32 0, 0
  %p61 = scmp.lt.s32.totalorder %s60, 0
  %s62 = scalar_select %p61, %s60, 0
  %s63 = smul.u32 2, %s62
  %p64 = scmp.lt.s32.totalorder %s63, 1
  %s65 = scalar_select %p64, %s63, 1
  %s66 = smul.addr %s65, 8
  %s67 = scalar_lea.vmem %s2, %s66
  %s68 = sadd.s32 0, 0
  %p69 = scmp.lt.s32.totalorder %s68, 0
  %s70 = scalar_select %p69, %s68, 0
  %s71 = smul.u32 2, %s70
  %s72 = sadd.s32 0, 0
  %p73 = scmp.lt.s32.totalorder %s72, 0
  %s74 = scalar_select %p73, %s72, 0
  %s75 = smul.u32 2, %s74
  %p76 = scmp.lt.s32.totalorder %s75, 1
  %s77 = scalar_select %p76, %s75, 1
  %s78 = smul.addr %s77, 8
  %s79 = scalar_lea.vmem %s3, %s78
  %s80 = sadd.s32 0, 0
  %p81 = scmp.lt.s32.totalorder %s80, 0
  %s82 = scalar_select %p81, %s80, 0
  %s83 = smul.u32 2, %s82
  %p84 = scmp.eq.s32.totalorder 0, 0
  // Predicated region
  $region10: #{weighted_bce_with_logits_loss.1} parent=0 // pred_check
    %p85 = pneg %p84
  $region11: #{weighted_bce_with_logits_loss.1} parent=0 // pred_check_branch
    %87 = sbr.rel (%p85) target = $region13
  $region12: #{weighted_bce_with_logits_loss.1} parent=0 // pred_region
    %88 = vst [vmem:[%s4] sm:$0xff] 0.0
  $region13: #{weighted_bce_with_logits_loss.1} parent=0 // pred_fallthru
    _
  %v89 = vld [vmem:[%s67] sm:$0xff]
  %v90 = vld [vmem:[%s67 + $0x8] sm:$0xff]
  %v91 = vld [vmem:[%s79] sm:$0xff]
  %v92 = vld [vmem:[%s79 + $0x8] sm:$0xff]
  %vm93 = vcmp.eq.f32.partialorder %v91, 1.0
  %vm94 = vcmp.eq.f32.partialorder %v92, 1.0
  %s95 = sld [smem:[#allocation4]]
  %vm96 = vcmp.eq.f32.partialorder %v91, 0.0
  %vm97 = vcmp.eq.f32.partialorder %v92, 0.0
  %s98 = sld [smem:[#allocation4 + $0x1]]
  %v99 = vstv %s98
  %v100 = vsel %vm96, %v99, 0.0
  %v101 = vsel %vm97, %v99, 0.0
  %v102 = vstv %s95
  %v103 = vsel %vm93, %v102, %v100
  %v104 = vsel %vm94, %v102, %v101
  %v105 = vmax.f32 %v89, 0.0
  %v106 = vmax.f32 %v90, 0.0
  %v107 = vmul.f32 %v89, %v91
  %v108 = vmul.f32 %v90, %v92
  %v109 = vsub.f32 %v105, %v107
  %v110 = vsub.f32 %v106, %v108
  %v111 = vand.u32 2147483647, %v89
  %v112 = vand.u32 2147483647, %v90
  %v113 = vsub.f32 0.0, %v111
  %v114 = vsub.f32 0.0, %v112
  %v115 = vmul.f32 %v113, 1.442695
  %v116 = vpow.pop %v115
  %v117 = vmul.f32 %v114, 1.442695
  %v118 = vpow.pop %v117
  %v119 = vadd.f32 %v116, 1.0
  %v120 = vlog2.pop %v119
  %v121 = vmul.f32 %v120, 0.6931472
  %v122 = vmul.f32 -0.5, %v116
  %v123 = vadd.f32 %v122, 1.0
  %v124 = vmul.f32 %v123, %v116
  %v125 = vand.u32 2147483647, %v116
  %vm126 = vcmp.lt.f32.partialorder %v125, 0.0004427343
  %v127 = vsel %vm126, %v124, %v121
  %v128 = vadd.f32 %v118, 1.0
  %v129 = vlog2.pop %v128
  %v130 = vmul.f32 %v129, 0.6931472
  %v131 = vmul.f32 -0.5, %v118
  %v132 = vadd.f32 %v131, 1.0
  %v133 = vmul.f32 %v132, %v118
  %v134 = vand.u32 2147483647, %v118
  %vm135 = vcmp.lt.f32.partialorder %v134, 0.0004427343
  %v136 = vsel %vm135, %v133, %v130
  %v137 = vadd.f32 %v109, %v127
  %v138 = vadd.f32 %v110, %v136
  %v139 = vmul.f32 %v103, %v137
  %v140 = vmul.f32 %v104, %v138
  %s141 = sadd.s32 0, 0
  %s142 = smul.u32 %s141, 16
  %s143 = sadd.s32 %s142, 16
  %s144 = sld [smem:[#allocation3]]
  %p145 = scmp.le.s32.totalorder %s143, %s144
  // Predicated region
  $region14: #{weighted_bce_with_logits_loss.1} parent=0 // pred_check
    %p146 = pneg %p145
  $region15: #{weighted_bce_with_logits_loss.1} parent=0 // pred_check_branch
    %148 = sbr.rel (%p146) target = $region17
  $region16: #{weighted_bce_with_logits_loss.1} parent=0 // pred_region
    %v149 = vld [vmem:[%s4] sm:$0xff]
    %v150 = vadd.f32 %v139, %v140
    %v151 = vadd.f32 %v149, %v150
    %152 = vst [vmem:[%s4] sm:$0xff] %v151
  $region17: #{weighted_bce_with_logits_loss.1} parent=0 // pred_fallthru
    _
  %p153 = scmp.gt.s32.totalorder %s143, %s144
  // Predicated region
  $region18: #{weighted_bce_with_logits_loss.1} parent=0 // pred_check
    %p154 = pneg %p153
  $region19: #{weighted_bce_with_logits_loss.1} parent=0 // pred_check_branch
    %156 = sbr.rel (%p154) target = $region21
  $region20: #{weighted_bce_with_logits_loss.1} parent=0 // pred_region
    %v157 = vlaneseq
    %v158 = vshrl.u32 %v157, 7
    %v159 = vadd.s32 %v158, 8
    %v160 = vstv %s142
    %v161 = vadd.s32 %v160, %v158
    %v162 = vadd.s32 %v160, %v159
    %s163 = sld [smem:[#allocation3]]
    %v164 = vstv %s163
    %vm165 = vcmp.lt.s32.totalorder %v161, %v164
    %vm166 = vcmp.lt.s32.totalorder %v162, %v164
    %v167 = vsel %vm165, %v139, 0.0
    %v168 = vsel %vm166, %v140, 0.0
    %v169 = vld [vmem:[%s4] sm:$0xff]
    %v170 = vadd.f32 %v167, %v168
    %v171 = vadd.f32 %v169, %v170
    %172 = vst [vmem:[%s4] sm:$0xff] %v171
  $region21: #{weighted_bce_with_logits_loss.1} parent=0 // pred_fallthru
    _
  // Predicated region
  $region22: #{weighted_bce_with_logits_loss.1} parent=0 // pred_check
    _
  $region23: #{weighted_bce_with_logits_loss.1} parent=0 // pred_check_branch
    %174 = sbr.rel (0) target = $region25
  $region24: #{weighted_bce_with_logits_loss.1} parent=0 // pred_region
    _
  $region25: #{weighted_bce_with_logits_loss.1} parent=0 // pred_fallthru
    _
  // Predicated region
  $region26: #{weighted_bce_with_logits_loss.1} parent=0 // pred_check
    _
  $region27: #{weighted_bce_with_logits_loss.1} parent=0 // pred_check_branch
    %176 = sbr.rel (0) target = $region29
  $region28: #{weighted_bce_with_logits_loss.1} parent=0 // pred_region
    _
  $region29: #{weighted_bce_with_logits_loss.1} parent=0 // pred_fallthru
    _

</llo_original>
